<compile_context>
chip_gen: v6e
topology: v6e:2x2x1
jax: 0.10.0
libtpu: 0.0.40
codegen_flags: <defaults>
</compile_context>

<pallas_src>
import jax
import jax.numpy as jnp
from jax import lax
from jax.experimental import pallas as pl
from jax.experimental.pallas import tpu as pltpu


def _kernel_regressor_kernel(x_ref, c_ref, c2_ref, w_ref, yt_ref):
    """Fused per-tile RBF-Gram + output matmul (transposed, lane-dense output).

    x_ref : (tile_n, D)  input tile, pre-scaled by sqrt(gamma)
    c_ref : (M, D)       centers, pre-scaled by sqrt(gamma)   (resident)
    c2_ref: (1, M)       precomputed gamma * ||c_j||^2        (resident)
    w_ref : (O, M)       weight matrix                        (resident)
    yt_ref: (O, tile_n)  transposed output tile
    """
    x = x_ref[...]                                            # f32

    # Cross term on the MXU: bf16 operands, f32 accumulation, no transpose.
    xc = lax.dot_general(
        x.astype(jnp.bfloat16), c_ref[...].astype(jnp.bfloat16),
        dimension_numbers=(((1,), (1,)), ((), ())),
        preferred_element_type=jnp.float32)                   # (tile_n, M)

    x2 = jnp.sum(x * x, axis=-1, keepdims=True)               # (tile_n, 1) f32
    # gamma is already folded into x / c / c2, so this IS gamma * ||x - c||^2.
    d2 = jnp.maximum(x2 + c2_ref[...] - 2.0 * xc, 0.0)
    gram = jnp.exp(-d2)                                       # (tile_n, M) f32 (EUP)

    # y^T = W @ Gram^T -> (O, tile_n); lane dim = tile_n (multiple of 128).
    yt_ref[...] = lax.dot_general(
        w_ref[...].astype(jnp.bfloat16), gram.astype(jnp.bfloat16),
        dimension_numbers=(((1,), (1,)), ((), ())),
        preferred_element_type=jnp.float32).astype(yt_ref.dtype)


def kernel_regressor(x, centers, W, gamma, *, tile_n=512):
    """y[i, o] = sum_j exp(-gamma * ||x_i - centers_j||^2) * W[o, j]."""
    N, D = x.shape
    M, Dc = centers.shape
    O, Mw = W.shape
    assert D == Dc and M == Mw

    # Loop-invariant work hoisted to the wrapper: fold gamma, precompute ||c||^2.
    s = jnp.float32(float(gamma) ** 0.5)
    xs = x.astype(jnp.float32) * s
    cs = centers.astype(jnp.float32) * s
    c2 = jnp.sum(cs * cs, axis=-1)[None, :]                   # (1, M)

    # Row tile: multiple of 128 so the transposed output is lane-dense;
    # clamped so small N is not over-padded, padded up to a tile multiple.
    tile_n = max(128, min(int(tile_n), pl.cdiv(N, 128) * 128))
    n_pad = pl.cdiv(N, tile_n) * tile_n
    if n_pad != N:
        xs = jnp.pad(xs, ((0, n_pad - N), (0, 0)))

    # VMEM budget: double-buffered x / y^T tiles, resident centers/c2/W
    # (constant index_maps -> fetched once), plus f32 intermediates (xc, gram, ...).
    est = 4 * (2 * tile_n * D + 2 * O * tile_n
               + 2 * (M * D + O * M + M) + 4 * tile_n * M)
    vmem_limit = int(min(max(est + (8 << 20), 16 << 20), 48 << 20))

    # NOTE: for production-sized M (e.g. >= 8K centers, large D) add an
    # M-reduction grid axis (accumulate y^T in a VMEM f32 scratch with
    # pl.when init/finalize, axis marked "arbitrary" and placed last) so that
    # centers/W need not be fully resident on v7x's 64 MiB VMEM.
    yt = pl.pallas_call(
        _kernel_regressor_kernel,
        out_shape=jax.ShapeDtypeStruct((O, n_pad), jnp.float32),
        grid_spec=pltpu.PrefetchScalarGridSpec(
            num_scalar_prefetch=0,
            grid=(n_pad // tile_n,),
            in_specs=[
                pl.BlockSpec((tile_n, D), lambda i: (i, 0)),   # x tile
                pl.BlockSpec((M, D), lambda i: (0, 0)),        # centers (resident)
                pl.BlockSpec((1, M), lambda i: (0, 0)),        # gamma*||c||^2 (resident)
                pl.BlockSpec((O, M), lambda i: (0, 0)),        # W (resident)
            ],
            out_specs=pl.BlockSpec((O, tile_n), lambda i: (0, i)),
        ),
        compiler_params=pltpu.CompilerParams(
            dimension_semantics=("parallel",),
            vmem_limit_bytes=vmem_limit),
    )(xs, cs, c2, W.astype(jnp.float32))

    # Transpose back in the XLA wrapper and drop padded rows.
    return yt.T[:N]                                           # (N, O)


if __name__ == "__main__":
    # Small, module-consistent shapes:
    #   N = 16 query points, input_dim D = 32, n_centers M = 128, output_dim O = 8
    N, D, M, O = 16, 32, 128, 8
    gamma = 1.0 / (2.0 * D)   # RBF bandwidth for the kernel function self.k

    key = jax.random.PRNGKey(0)
    kx, kc, kw = jax.random.split(key, 3)
    x = jax.random.normal(kx, (N, D), dtype=jnp.float32)
    centers = jax.random.normal(kc, (M, D), dtype=jnp.float32)
    # Deterministic stand-in for np.random.normal(0, 1, (output_dim, n_centers))
    W = jax.random.normal(kw, (O, M), dtype=jnp.float32)

    y = kernel_regressor(x, centers, W, gamma)
    y = jax.block_until_ready(y)

    # Pure-JAX f32 reference of the PyTorch forward: Gram @ W^T
    d2_ref = jnp.sum((x[:, None, :] - centers[None, :, :]) ** 2, axis=-1)
    gram_ref = jnp.exp(-gamma * d2_ref)
    y_ref = gram_ref @ W.T

    assert y.shape == (N, O)
    # bf16 MXU operands (f32 accumulation) -> slightly looser tolerance.
    max_err = float(jnp.max(jnp.abs(y - y_ref)))
    rel_err = float(jnp.linalg.norm(y - y_ref) / jnp.linalg.norm(y_ref))
    assert max_err < 1e-1 and rel_err < 1e-2, (max_err, rel_err)
    print("KERNEL_OK")
</pallas_src>

<mosaic_0001>
module attributes {stable_mosaic.version = 11 : i64} {
  func.func @_kernel_regressor_kernel(%arg0: i32, %arg1: memref<128x32xf32, #tpu.memory_space<vmem>>, %arg2: memref<128x32xf32, #tpu.memory_space<vmem>>, %arg3: memref<1x128xf32, #tpu.memory_space<vmem>>, %arg4: memref<8x128xf32, #tpu.memory_space<vmem>>, %arg5: memref<8x128xf32, #tpu.memory_space<vmem>>) attributes {dimension_semantics = [#tpu.dimension_semantics<parallel>], iteration_bounds = array<i64: 1>, scalar_prefetch = 0 : i64, scratch_operands = 0 : i64, tpu.core_type = #tpu.core_type<tc>, window_params = [{transform_indices = @transform_0, window_bounds = array<i64: 128, 32>}, {pipeline_mode = #tpu.pipeline_mode<synchronous>, transform_indices = @transform_1, window_bounds = array<i64: 128, 32>}, {pipeline_mode = #tpu.pipeline_mode<synchronous>, transform_indices = @transform_2, window_bounds = array<i64: 1, 128>}, {pipeline_mode = #tpu.pipeline_mode<synchronous>, transform_indices = @transform_3, window_bounds = array<i64: 8, 128>}, {transform_indices = @transform_4, window_bounds = array<i64: 8, 128>}]} {
    %c0 = arith.constant 0 : index
    %c0_0 = arith.constant 0 : index
    %0 = vector.load %arg1[%c0, %c0_0] : memref<128x32xf32, #tpu.memory_space<vmem>>, vector<128x32xf32>
    %1 = arith.truncf %0 : vector<128x32xf32> to vector<128x32xbf16>
    %c0_1 = arith.constant 0 : index
    %c0_2 = arith.constant 0 : index
    %2 = vector.load %arg2[%c0_1, %c0_2] : memref<128x32xf32, #tpu.memory_space<vmem>>, vector<128x32xf32>
    %3 = arith.truncf %2 : vector<128x32xf32> to vector<128x32xbf16>
    %cst = arith.constant dense<0.000000e+00> : vector<128x128xf32>
    %4 = tpu.matmul %1, %3, %cst {dimension_numbers = #tpu.dot_dimension_numbers<[1], [1], [0], [0], [0, 0, 1, 0], [], []>} : vector<128x32xbf16>, vector<128x32xbf16>, vector<128x128xf32> -> vector<128x128xf32>
    %5 = arith.mulf %0, %0 : vector<128x32xf32>
    %cst_3 = arith.constant dense<0.000000e+00> : vector<128xf32>
    %6 = vector.multi_reduction <add>, %5, %cst_3 [1] : vector<128x32xf32> to vector<128xf32>
    %7 = vector.shape_cast %6 : vector<128xf32> to vector<128x1xf32>
    %c0_4 = arith.constant 0 : index
    %c0_5 = arith.constant 0 : index
    %8 = vector.load %arg3[%c0_4, %c0_5] : memref<1x128xf32, #tpu.memory_space<vmem>>, vector<1x128xf32>
    %9 = vector.broadcast %7 : vector<128x1xf32> to vector<128x128xf32>
    %10 = vector.broadcast %8 : vector<1x128xf32> to vector<128x128xf32>
    %11 = arith.addf %9, %10 : vector<128x128xf32>
    %cst_6 = arith.constant 2.000000e+00 : f32
    %12 = vector.broadcast %cst_6 : f32 to vector<128x128xf32>
    %13 = arith.mulf %12, %4 : vector<128x128xf32>
    %14 = arith.subf %11, %13 : vector<128x128xf32>
    %cst_7 = arith.constant 0.000000e+00 : f32
    %15 = vector.broadcast %cst_7 : f32 to vector<128x128xf32>
    %16 = arith.maximumf %14, %15 : vector<128x128xf32>
    %cst_8 = arith.constant 0.000000e+00 : f32
    %17 = vector.broadcast %cst_8 : f32 to vector<128x128xf32>
    %18 = arith.subf %17, %16 : vector<128x128xf32>
    %19 = math.exp %18 : vector<128x128xf32>
    %c0_9 = arith.constant 0 : index
    %c0_10 = arith.constant 0 : index
    %20 = vector.load %arg4[%c0_9, %c0_10] : memref<8x128xf32, #tpu.memory_space<vmem>>, vector<8x128xf32>
    %21 = arith.truncf %20 : vector<8x128xf32> to vector<8x128xbf16>
    %22 = arith.truncf %19 : vector<128x128xf32> to vector<128x128xbf16>
    %cst_11 = arith.constant dense<0.000000e+00> : vector<8x128xf32>
    %23 = tpu.matmul %21, %22, %cst_11 {dimension_numbers = #tpu.dot_dimension_numbers<[1], [1], [0], [0], [0, 0, 1, 0], [], []>} : vector<8x128xbf16>, vector<128x128xbf16>, vector<8x128xf32> -> vector<8x128xf32>
    %c0_12 = arith.constant 0 : index
    %c0_13 = arith.constant 0 : index
    %24 = vector.load %arg5[%c0_12, %c0_13] : memref<8x128xf32, #tpu.memory_space<vmem>>, vector<8x128xf32>
    tpu.vector_store %arg5[%c0_12, %c0_13], %23 {strides = array<i32>} : memref<8x128xf32, #tpu.memory_space<vmem>>, vector<8x128xf32>,
    return
  }
  func.func @transform_0(%arg0: i32) -> (i32, i32) {
    %c0_i32 = arith.constant 0 : i32
    %c0_i32_0 = arith.constant 0 : i32
    return %arg0, %c0_i32 : i32, i32
  }
  func.func @transform_1(%arg0: i32) -> (i32, i32) {
    %c0_i32 = arith.constant 0 : i32
    %c0_i32_0 = arith.constant 0 : i32
    %c0_i32_1 = arith.constant 0 : i32
    return %c0_i32, %c0_i32_0 : i32, i32
  }
  func.func @transform_2(%arg0: i32) -> (i32, i32) {
    %c0_i32 = arith.constant 0 : i32
    %c0_i32_0 = arith.constant 0 : i32
    %c0_i32_1 = arith.constant 0 : i32
    return %c0_i32, %c0_i32_0 : i32, i32
  }
  func.func @transform_3(%arg0: i32) -> (i32, i32) {
    %c0_i32 = arith.constant 0 : i32
    %c0_i32_0 = arith.constant 0 : i32
    %c0_i32_1 = arith.constant 0 : i32
    return %c0_i32, %c0_i32_0 : i32, i32
  }
  func.func @transform_4(%arg0: i32) -> (i32, i32) {
    %c0_i32 = arith.constant 0 : i32
    %c0_i32_0 = arith.constant 0 : i32
    return %c0_i32, %arg0 : i32, i32
  }
}

</mosaic_0001>

<llo_original>
// kernel: tpu_custom_call.1
$region0: #{tpu_custom_call.1}
  #allocation0 [shape = 'u32[]', space=smem, size = 0x4, offset = 0x4, fixed_abs, tag = 'smem constant byte address 0x4 - core index']
  #allocation1 [shape = 'u32[144,128]{1,0:T(1,128)}', space=vmem, size = 0x12000, scoped, tag = 'internal scratch']
  %s0 = inlined_call_operand.vmem [shape: f32[128,32], index: 0, kind: input, shape index: {}]
  %s1 = inlined_call_operand.vmem [shape: f32[128,32], index: 1, kind: input, shape index: {}]
  %s2 = inlined_call_operand.vmem [shape: f32[1,128], index: 2, kind: input, shape index: {}]
  %s3 = inlined_call_operand.vmem [shape: f32[8,128], index: 3, kind: input, shape index: {}]
  %s4 = inlined_call_operand.hbm [shape: f32[8,128], index: 4, kind: output, shape index: {}]
  %s5 = sld [smem:[#allocation0]]
  $region26: #{tpu_custom_call.1} parent=0
    _
  %s7 = ssub.s32 1, %s5
  %s8 = scalar_select 0, %s7, %s5
  $region1: #{tpu_custom_call.1} parent=0
    #allocation2 [shape = 'u8[4096]{0}', space=vmem, size = 0x1000, scoped, tag = 'output window, operand 0, single buffered']
    #allocation3 [shape = 's32[1]{0}', space=sflag, size = 0x4, scoped, tag = 'scoped memory for tpu_custom_call.1']
    %9 = vsyncpa [#allocation3], 0
    // Predicated region
    $region2: #{tpu_custom_call.1} parent=1 // pred_check
      _
    $region3: #{tpu_custom_call.1} parent=1 // pred_check_branch
      %11 = sbr.rel (0) target = $region5
    $region4: #{tpu_custom_call.1} parent=1 // pred_region
      _
    $region5: #{tpu_custom_call.1} parent=1 // pred_fallthru
      _
    // Predicated region
    $region6: #{tpu_custom_call.1} parent=1 // pred_check
      _
    $region7: #{tpu_custom_call.1} parent=1 // pred_check_branch
      %13 = sbr.rel (0) target = $region9
    $region8: #{tpu_custom_call.1} parent=1 // pred_region
      _
    $region9: #{tpu_custom_call.1} parent=1 // pred_fallthru
      _
    // Predicated region
    $region10: #{tpu_custom_call.1} parent=1 // pred_check
      _
    $region11: #{tpu_custom_call.1} parent=1 // pred_check_branch
      %15 = sbr.rel (0) target = $region13
    $region12: #{tpu_custom_call.1} parent=1 // pred_region
      _
    $region13: #{tpu_custom_call.1} parent=1 // pred_fallthru
      _
    // Predicated region
    $region14: #{tpu_custom_call.1} parent=1 // pred_check
      _
    $region15: #{tpu_custom_call.1} parent=1 // pred_check_branch
      %17 = sbr.rel (0) target = $region17
    $region16: #{tpu_custom_call.1} parent=1 // pred_region
      _
    $region17: #{tpu_custom_call.1} parent=1 // pred_fallthru
      _
    %v19 = vld [vmem:[%s0] sm:$0xff]
    %v20 = vld [vmem:[%s0 + $0x8] sm:$0xff]
    %v21 = vld [vmem:[%s0 + $0x10] sm:$0xff]
    %v22 = vld [vmem:[%s0 + $0x18] sm:$0xff]
    %v23 = vld [vmem:[%s0 + $0x20] sm:$0xff]
    %v24 = vld [vmem:[%s0 + $0x28] sm:$0xff]
    %v25 = vld [vmem:[%s0 + $0x30] sm:$0xff]
    %v26 = vld [vmem:[%s0 + $0x38] sm:$0xff]
    %v27 = vld [vmem:[%s0 + $0x40] sm:$0xff]
    %v28 = vld [vmem:[%s0 + $0x48] sm:$0xff]
    %v29 = vld [vmem:[%s0 + $0x50] sm:$0xff]
    %v30 = vld [vmem:[%s0 + $0x58] sm:$0xff]
    %v31 = vld [vmem:[%s0 + $0x60] sm:$0xff]
    %v32 = vld [vmem:[%s0 + $0x68] sm:$0xff]
    %v33 = vld [vmem:[%s0 + $0x70] sm:$0xff]
    %v34 = vld [vmem:[%s0 + $0x78] sm:$0xff]
    %v35 = vpack.c.bf16 %v20, %v19
    %v36 = vpack.c.bf16 %v22, %v21
    %v37 = vpack.c.bf16 %v24, %v23
    %v38 = vpack.c.bf16 %v26, %v25
    %v39 = vpack.c.bf16 %v28, %v27
    %v40 = vpack.c.bf16 %v30, %v29
    %v41 = vpack.c.bf16 %v32, %v31
    %v42 = vpack.c.bf16 %v34, %v33
    %v43 = vld [vmem:[%s1] sm:$0xff]
    %v44 = vld [vmem:[%s1 + $0x8] sm:$0xff]
    %v45 = vld [vmem:[%s1 + $0x10] sm:$0xff]
    %v46 = vld [vmem:[%s1 + $0x18] sm:$0xff]
    %v47 = vld [vmem:[%s1 + $0x20] sm:$0xff]
    %v48 = vld [vmem:[%s1 + $0x28] sm:$0xff]
    %v49 = vld [vmem:[%s1 + $0x30] sm:$0xff]
    %v50 = vld [vmem:[%s1 + $0x38] sm:$0xff]
    %v51 = vld [vmem:[%s1 + $0x40] sm:$0xff]
    %v52 = vld [vmem:[%s1 + $0x48] sm:$0xff]
    %v53 = vld [vmem:[%s1 + $0x50] sm:$0xff]
    %v54 = vld [vmem:[%s1 + $0x58] sm:$0xff]
    %v55 = vld [vmem:[%s1 + $0x60] sm:$0xff]
    %v56 = vld [vmem:[%s1 + $0x68] sm:$0xff]
    %v57 = vld [vmem:[%s1 + $0x70] sm:$0xff]
    %v58 = vld [vmem:[%s1 + $0x78] sm:$0xff]
    %v59 = vpack.c.bf16 %v44, %v43
    %v60 = vpack.c.bf16 %v46, %v45
    %v61 = vpack.c.bf16 %v48, %v47
    %v62 = vpack.c.bf16 %v50, %v49
    %v63 = vpack.c.bf16 %v52, %v51
    %v64 = vpack.c.bf16 %v54, %v53
    %v65 = vpack.c.bf16 %v56, %v55
    %v66 = vpack.c.bf16 %v58, %v57
    %vm67 = vcmask 261120
    %v69 = vsel %vm67, %v35, 0
    %v72 = vsel %vm67, %v36, 0
    %v75 = vsel %vm67, %v37, 0
    %v78 = vsel %vm67, %v38, 0
    %v81 = vsel %vm67, %v39, 0
    %v84 = vsel %vm67, %v40, 0
    %v87 = vsel %vm67, %v41, 0
    %v90 = vsel %vm67, %v42, 0
    %v93 = vsel %vm67, %v59, 0
    %v96 = vsel %vm67, %v60, 0
    %v99 = vsel %vm67, %v61, 0
    %v102 = vsel %vm67, %v62, 0
    %v105 = vsel %vm67, %v63, 0
    %v108 = vsel %vm67, %v64, 0
    %v111 = vsel %vm67, %v65, 0
    %v114 = vsel %vm67, %v66, 0
    %116 = vmatprep.subr.bf16.mxu0 0
    %117 = vmatpush1.bf16.xpose.msra.mxu0 %v114
    %118 = vmatprep.subr.bf16.mxu0 0
    %119 = vmatpush1.bf16.xpose.msra.mxu0 %v111
    %120 = vmatprep.subr.bf16.mxu0 0
    %121 = vmatpush1.bf16.xpose.msra.mxu0 %v108
    %122 = vmatprep.subr.bf16.mxu0 0
    %123 = vmatpush1.bf16.xpose.msra.mxu0 %v105
    %124 = vmatprep.subr.bf16.mxu0 0
    %125 = vmatpush1.bf16.xpose.msra.mxu0 %v102
    %126 = vmatprep.subr.bf16.mxu0 0
    %127 = vmatpush1.bf16.xpose.msra.mxu0 %v99
    %128 = vmatprep.subr.bf16.mxu0 0
    %129 = vmatpush1.bf16.xpose.msra.mxu0 %v96
    %130 = vmatprep.subr.bf16.mxu0 0
    %131 = vmatpush1.bf16.xpose.msra.mxu0 %v93
    %132 = vmatprep.subr.bf16.mxu0 0
    %133 = vmatpush2.bf16.xpose.msra.mxu0 0
    %134 = vmatprep.subr.bf16.mxu0 0
    %135 = vmatpush2.bf16.xpose.msra.mxu0 0
    %136 = vmatprep.subr.bf16.mxu0 0
    %137 = vmatpush2.bf16.xpose.msra.mxu0 0
    %138 = vmatprep.subr.bf16.mxu0 0
    %139 = vmatpush2.bf16.xpose.msra.mxu0 0
    %140 = vmatprep.subr.bf16.mxu0 0
    %141 = vmatpush2.bf16.xpose.msra.mxu0 0
    %142 = vmatprep.subr.bf16.mxu0 0
    %143 = vmatpush2.bf16.xpose.msra.mxu0 0
    %144 = vmatprep.subr.bf16.mxu0 0
    %145 = vmatpush2.bf16.xpose.msra.mxu0 0
    %146 = vmatprep.subr.bf16.mxu0 0
    %147 = vmatpush2.bf16.xpose.msra.mxu0 0
    %148 = vmatprep.mubr.bf16.mxu0 0
    %149 = vmatmul.mubr.bf16.gmra.mxu0 %v69
    %v150 = vpop.f32.mrf.mxu0
    %v151 = vadd.f32 0.0, %v150
    %v152 = vpop.f32.mrf.mxu0
    %v153 = vpop.f32.mrf.mxu0
    %v154 = vadd.f32 0.0, %v153
    %v155 = vpop.f32.mrf.mxu0
    %156 = vmatprep.mubr.bf16.mxu0 0
    %157 = vmatmul.mubr.bf16.gmra.mxu0 %v72
    %v158 = vpop.f32.mrf.mxu0
    %v159 = vadd.f32 0.0, %v158
    %v160 = vpop.f32.mrf.mxu0
    %v161 = vpop.f32.mrf.mxu0
    %v162 = vadd.f32 0.0, %v161
    %v163 = vpop.f32.mrf.mxu0
    %164 = vmatprep.mubr.bf16.mxu0 0
    %165 = vmatmul.mubr.bf16.gmra.mxu0 %v75
    %v166 = vpop.f32.mrf.mxu0
    %v167 = vadd.f32 0.0, %v166
    %v168 = vpop.f32.mrf.mxu0
    %v169 = vpop.f32.mrf.mxu0
    %v170 = vadd.f32 0.0, %v169
    %v171 = vpop.f32.mrf.mxu0
    %172 = vmatprep.mubr.bf16.mxu0 0
    %173 = vmatmul.mubr.bf16.gmra.mxu0 %v78
    %v174 = vpop.f32.mrf.mxu0
    %v175 = vadd.f32 0.0, %v174
    %v176 = vpop.f32.mrf.mxu0
    %v177 = vpop.f32.mrf.mxu0
    %v178 = vadd.f32 0.0, %v177
    %v179 = vpop.f32.mrf.mxu0
    %180 = vmatprep.mubr.bf16.mxu0 0
    %181 = vmatmul.mubr.bf16.gmra.mxu0 %v81
    %v182 = vpop.f32.mrf.mxu0
    %v183 = vadd.f32 0.0, %v182
    %v184 = vpop.f32.mrf.mxu0
    %v185 = vpop.f32.mrf.mxu0
    %v186 = vadd.f32 0.0, %v185
    %v187 = vpop.f32.mrf.mxu0
    %188 = vmatprep.mubr.bf16.mxu0 0
    %189 = vmatmul.mubr.bf16.gmra.mxu0 %v84
    %v190 = vpop.f32.mrf.mxu0
    %v191 = vadd.f32 0.0, %v190
    %v192 = vpop.f32.mrf.mxu0
    %v193 = vpop.f32.mrf.mxu0
    %v194 = vadd.f32 0.0, %v193
    %v195 = vpop.f32.mrf.mxu0
    %196 = vmatprep.mubr.bf16.mxu0 0
    %197 = vmatmul.mubr.bf16.gmra.mxu0 %v87
    %v198 = vpop.f32.mrf.mxu0
    %v199 = vadd.f32 0.0, %v198
    %v200 = vpop.f32.mrf.mxu0
    %v201 = vpop.f32.mrf.mxu0
    %v202 = vadd.f32 0.0, %v201
    %v203 = vpop.f32.mrf.mxu0
    %204 = vmatprep.mubr.bf16.mxu0 0
    %205 = vmatmul.mubr.bf16.gmra.mxu0 %v90
    %v206 = vpop.f32.mrf.mxu0
    %v207 = vadd.f32 0.0, %v206
    %v208 = vpop.f32.mrf.mxu0
    %v209 = vpop.f32.mrf.mxu0
    %v210 = vadd.f32 0.0, %v209
    %v211 = vpop.f32.mrf.mxu0
    %212 = vdwg.mxu0
    %v213 = vmul.f32 %v19, %v19
    %v214 = vmul.f32 %v20, %v20
    %v215 = vmul.f32 %v21, %v21
    %v216 = vmul.f32 %v22, %v22
    %v217 = vmul.f32 %v23, %v23
    %v218 = vmul.f32 %v24, %v24
    %v219 = vmul.f32 %v25, %v25
    %v220 = vmul.f32 %v26, %v26
    %v221 = vmul.f32 %v27, %v27
    %v222 = vmul.f32 %v28, %v28
    %v223 = vmul.f32 %v29, %v29
    %v224 = vmul.f32 %v30, %v30
    %v225 = vmul.f32 %v31, %v31
    %v226 = vmul.f32 %v32, %v32
    %v227 = vmul.f32 %v33, %v33
    %v228 = vmul.f32 %v34, %v34
    %v229 = vsel %vm67, %v213, 0.0
    %230 = vadd.xlane.f32.xlu0 %v229
    %v231 = vpop.xlane.xlu0 %230
    %v232 = vsel %vm67, %v214, 0.0
    %233 = vadd.xlane.f32.xlu0 %v232
    %v234 = vpop.xlane.xlu0 %233
    %v235 = vsel %vm67, %v215, 0.0
    %236 = vadd.xlane.f32.xlu0 %v235
    %v237 = vpop.xlane.xlu0 %236
    %v238 = vsel %vm67, %v216, 0.0
    %239 = vadd.xlane.f32.xlu0 %v238
    %v240 = vpop.xlane.xlu0 %239
    %v241 = vsel %vm67, %v217, 0.0
    %242 = vadd.xlane.f32.xlu0 %v241
    %v243 = vpop.xlane.xlu0 %242
    %v244 = vsel %vm67, %v218, 0.0
    %245 = vadd.xlane.f32.xlu0 %v244
    %v246 = vpop.xlane.xlu0 %245
    %v247 = vsel %vm67, %v219, 0.0
    %248 = vadd.xlane.f32.xlu0 %v247
    %v249 = vpop.xlane.xlu0 %248
    %v250 = vsel %vm67, %v220, 0.0
    %251 = vadd.xlane.f32.xlu0 %v250
    %v252 = vpop.xlane.xlu0 %251
    %v253 = vsel %vm67, %v221, 0.0
    %254 = vadd.xlane.f32.xlu0 %v253
    %v255 = vpop.xlane.xlu0 %254
    %v256 = vsel %vm67, %v222, 0.0
    %257 = vadd.xlane.f32.xlu0 %v256
    %v258 = vpop.xlane.xlu0 %257
    %v259 = vsel %vm67, %v223, 0.0
    %260 = vadd.xlane.f32.xlu0 %v259
    %v261 = vpop.xlane.xlu0 %260
    %v262 = vsel %vm67, %v224, 0.0
    %263 = vadd.xlane.f32.xlu0 %v262
    %v264 = vpop.xlane.xlu0 %263
    %v265 = vsel %vm67, %v225, 0.0
    %266 = vadd.xlane.f32.xlu0 %v265
    %v267 = vpop.xlane.xlu0 %266
    %v268 = vsel %vm67, %v226, 0.0
    %269 = vadd.xlane.f32.xlu0 %v268
    %v270 = vpop.xlane.xlu0 %269
    %v271 = vsel %vm67, %v227, 0.0
    %272 = vadd.xlane.f32.xlu0 %v271
    %v273 = vpop.xlane.xlu0 %272
    %v274 = vsel %vm67, %v228, 0.0
    %275 = vadd.xlane.f32.xlu0 %v274
    %v276 = vpop.xlane.xlu0 %275
    %v277 = vld [vmem:[%s2] sm:$0x1]
    %v279 = vlaneseq
    %v280 = vshrl.u32 %v279, 7
    %v281 = vsub.s32 0, %v280
    %v282 = vrot.slane %v277, %v281
    %v284 = vadd.f32 %v231, %v282
    %v285 = vadd.f32 %v234, %v282
    %v286 = vadd.f32 %v237, %v282
    %v287 = vadd.f32 %v240, %v282
    %v288 = vadd.f32 %v243, %v282
    %v289 = vadd.f32 %v246, %v282
    %v290 = vadd.f32 %v249, %v282
    %v291 = vadd.f32 %v252, %v282
    %v292 = vadd.f32 %v255, %v282
    %v293 = vadd.f32 %v258, %v282
    %v294 = vadd.f32 %v261, %v282
    %v295 = vadd.f32 %v264, %v282
    %v296 = vadd.f32 %v267, %v282
    %v297 = vadd.f32 %v270, %v282
    %v298 = vadd.f32 %v273, %v282
    %v299 = vadd.f32 %v276, %v282
    %v300 = vmul.f32 %v151, 2.0
    %v301 = vmul.f32 %v154, 2.0
    %v302 = vmul.f32 %v159, 2.0
    %v303 = vmul.f32 %v162, 2.0
    %v304 = vmul.f32 %v167, 2.0
    %v305 = vmul.f32 %v170, 2.0
    %v306 = vmul.f32 %v175, 2.0
    %v307 = vmul.f32 %v178, 2.0
    %v308 = vmul.f32 %v183, 2.0
    %v309 = vmul.f32 %v186, 2.0
    %v310 = vmul.f32 %v191, 2.0
    %v311 = vmul.f32 %v194, 2.0
    %v312 = vmul.f32 %v199, 2.0
    %v313 = vmul.f32 %v202, 2.0
    %v314 = vmul.f32 %v207, 2.0
    %v315 = vmul.f32 %v210, 2.0
    %v316 = vsub.f32 %v284, %v300
    %v317 = vsub.f32 %v285, %v301
    %v318 = vsub.f32 %v286, %v302
    %v319 = vsub.f32 %v287, %v303
    %v320 = vsub.f32 %v288, %v304
    %v321 = vsub.f32 %v289, %v305
    %v322 = vsub.f32 %v290, %v306
    %v323 = vsub.f32 %v291, %v307
    %v324 = vsub.f32 %v292, %v308
    %v325 = vsub.f32 %v293, %v309
    %v326 = vsub.f32 %v294, %v310
    %v327 = vsub.f32 %v295, %v311
    %v328 = vsub.f32 %v296, %v312
    %v329 = vsub.f32 %v297, %v313
    %v330 = vsub.f32 %v298, %v314
    %v331 = vsub.f32 %v299, %v315
    %v332 = vmax.f32 %v316, 0.0
    %v333 = vmax.f32 %v317, 0.0
    %v334 = vmax.f32 %v318, 0.0
    %v335 = vmax.f32 %v319, 0.0
    %v336 = vmax.f32 %v320, 0.0
    %v337 = vmax.f32 %v321, 0.0
    %v338 = vmax.f32 %v322, 0.0
    %v339 = vmax.f32 %v323, 0.0
    %v340 = vmax.f32 %v324, 0.0
    %v341 = vmax.f32 %v325, 0.0
    %v342 = vmax.f32 %v326, 0.0
    %v343 = vmax.f32 %v327, 0.0
    %v344 = vmax.f32 %v328, 0.0
    %v345 = vmax.f32 %v329, 0.0
    %v346 = vmax.f32 %v330, 0.0
    %v347 = vmax.f32 %v331, 0.0
    %v348 = vsub.f32 0.0, %v332
    %v349 = vsub.f32 0.0, %v333
    %v350 = vsub.f32 0.0, %v334
    %v351 = vsub.f32 0.0, %v335
    %v352 = vsub.f32 0.0, %v336
    %v353 = vsub.f32 0.0, %v337
    %v354 = vsub.f32 0.0, %v338
    %v355 = vsub.f32 0.0, %v339
    %v356 = vsub.f32 0.0, %v340
    %v357 = vsub.f32 0.0, %v341
    %v358 = vsub.f32 0.0, %v342
    %v359 = vsub.f32 0.0, %v343
    %v360 = vsub.f32 0.0, %v344
    %v361 = vsub.f32 0.0, %v345
    %v362 = vsub.f32 0.0, %v346
    %v363 = vsub.f32 0.0, %v347
    %v364 = vmul.f32 %v348, 1.442695
    %v365 = vpow.pop %v364
    %v366 = vmul.f32 %v349, 1.442695
    %v367 = vpow.pop %v366
    %v368 = vmul.f32 %v350, 1.442695
    %v369 = vpow.pop %v368
    %v370 = vmul.f32 %v351, 1.442695
    %v371 = vpow.pop %v370
    %v372 = vmul.f32 %v352, 1.442695
    %v373 = vpow.pop %v372
    %v374 = vmul.f32 %v353, 1.442695
    %v375 = vpow.pop %v374
    %v376 = vmul.f32 %v354, 1.442695
    %v377 = vpow.pop %v376
    %v378 = vmul.f32 %v355, 1.442695
    %v379 = vpow.pop %v378
    %v380 = vmul.f32 %v356, 1.442695
    %v381 = vpow.pop %v380
    %v382 = vmul.f32 %v357, 1.442695
    %v383 = vpow.pop %v382
    %v384 = vmul.f32 %v358, 1.442695
    %v385 = vpow.pop %v384
    %v386 = vmul.f32 %v359, 1.442695
    %v387 = vpow.pop %v386
    %v388 = vmul.f32 %v360, 1.442695
    %v389 = vpow.pop %v388
    %v390 = vmul.f32 %v361, 1.442695
    %v391 = vpow.pop %v390
    %v392 = vmul.f32 %v362, 1.442695
    %v393 = vpow.pop %v392
    %v394 = vmul.f32 %v363, 1.442695
    %v395 = vpow.pop %v394
    %v396 = vld [vmem:[%s3] sm:$0xff]
    %v397 = vpack.c.bf16 %v396, %v396
    %v398 = vpack.c.bf16 %v367, %v365
    %v399 = vpack.c.bf16 %v371, %v369
    %v400 = vpack.c.bf16 %v375, %v373
    %v401 = vpack.c.bf16 %v379, %v377
    %v402 = vpack.c.bf16 %v383, %v381
    %v403 = vpack.c.bf16 %v387, %v385
    %v404 = vpack.c.bf16 %v391, %v389
    %v405 = vpack.c.bf16 %v395, %v393
    %406 = vmatprep.subr.bf16.mxu0 0
    %407 = vmatpush1.bf16.xpose.msra.mxu0 %v405
    %408 = vmatprep.subr.bf16.mxu0 0
    %409 = vmatpush1.bf16.xpose.msra.mxu0 %v404
    %410 = vmatprep.subr.bf16.mxu0 0
    %411 = vmatpush1.bf16.xpose.msra.mxu0 %v403
    %412 = vmatprep.subr.bf16.mxu0 0
    %413 = vmatpush1.bf16.xpose.msra.mxu0 %v402
    %414 = vmatprep.subr.bf16.mxu0 0
    %415 = vmatpush1.bf16.xpose.msra.mxu0 %v401
    %416 = vmatprep.subr.bf16.mxu0 0
    %417 = vmatpush1.bf16.xpose.msra.mxu0 %v400
    %418 = vmatprep.subr.bf16.mxu0 0
    %419 = vmatpush1.bf16.xpose.msra.mxu0 %v399
    %420 = vmatprep.subr.bf16.mxu0 0
    %421 = vmatpush1.bf16.xpose.msra.mxu0 %v398
    %422 = vmatprep.subr.bf16.mxu0 0
    %423 = vmatpush2.bf16.xpose.msra.mxu0 0
    %424 = vmatprep.subr.bf16.mxu0 0
    %425 = vmatpush2.bf16.xpose.msra.mxu0 0
    %426 = vmatprep.subr.bf16.mxu0 0
    %427 = vmatpush2.bf16.xpose.msra.mxu0 0
    %428 = vmatprep.subr.bf16.mxu0 0
    %429 = vmatpush2.bf16.xpose.msra.mxu0 0
    %430 = vmatprep.subr.bf16.mxu0 0
    %431 = vmatpush2.bf16.xpose.msra.mxu0 0
    %432 = vmatprep.subr.bf16.mxu0 0
    %433 = vmatpush2.bf16.xpose.msra.mxu0 0
    %434 = vmatprep.subr.bf16.mxu0 0
    %435 = vmatpush2.bf16.xpose.msra.mxu0 0
    %436 = vmatprep.subr.bf16.mxu0 0
    %437 = vmatpush2.bf16.xpose.msra.mxu0 0
    %438 = vmatprep.mubr.bf16.mxu0 0
    %439 = vmatmul.mubr.bf16.gmra.mxu0 %v397
    %v440 = vpop.f32.mrf.mxu0
    %v441 = vadd.f32 0.0, %v440
    %v442 = vpop.f32.mrf.mxu0
    %v443 = vpop.f32.mrf.mxu0
    %v444 = vpop.f32.mrf.mxu0
    %445 = vdwg.mxu0
    %446 = vst [vmem:[#allocation2] sm:$0xff] %v441
    // Predicated region
    $region18: #{tpu_custom_call.1} parent=1 // pred_check
      _
    $region19: #{tpu_custom_call.1} parent=1 // pred_check_branch
      %448 = sbr.rel (0) target = $region21
    $region20: #{tpu_custom_call.1} parent=1 // pred_region
      %s450 = ssub.s32 128, 128
      %451 = vsyncadd [#allocation3], %s450
      %s453 = sshll.u32 [#allocation2], 4
      %s454 = int_to_ptr.vmem [resolvable:$true] %s453
      %456 = dma.vmem_to_hbm [thread:$0]  %s454, 128, %s4, [#allocation3]
    $region21: #{tpu_custom_call.1} parent=1 // pred_fallthru
      _
    // Predicated region
    $region22: #{tpu_custom_call.1} parent=1 // pred_check
      _
    $region23: #{tpu_custom_call.1} parent=1 // pred_check_branch
      %458 = sbr.rel (0) target = $region25
    $region24: #{tpu_custom_call.1} parent=1 // pred_region
      %459 = dma.done [#allocation3], 128
    $region25: #{tpu_custom_call.1} parent=1 // pred_fallthru
      _
    %460 = vsyncpa [#allocation3], 1

</llo_original>
